<compile_context>
chip_gen: v7x
topology: tpu7x:2x2x1
jax: 0.10.0
libtpu: 0.0.40
codegen_flags: <defaults>
</compile_context>

<pallas_src>
import functools

import numpy as np
import jax
import jax.numpy as jnp
from jax.experimental import pallas as pl
from jax.experimental.pallas import tpu as pltpu

_MAX_TILE = 2048


def _trilinear_kernel(grid_ref, coords_ref, didx_ref, hidx_ref, widx_ref,
                      rd_ref, rh_ref, out_ref, *, Dv, Hv, Wv):
    # grid_ref  : (Wv, Dv*Hv) f32 resident; grid_ref[w, d*Hv + h] = grid[d,h,w]
    # coords_ref: (3, tp)     f32, rows = (x, y, z) in [-1, 1] (torch: x->W,
    #                              y->H, z->D)
    # didx_ref  : (Dv, 1) f32 constant voxel indices 0..Dv-1
    # hidx_ref  : (Hv, 1) f32 constant
    # widx_ref  : (Wv, 1) f32 constant
    # rd_ref    : (Dv*Hv, Dv) f32 constant 0/1: rd[d*Hv+h, d] = 1
    # rh_ref    : (Dv*Hv, Hv) f32 constant 0/1: rh[d*Hv+h, h] = 1
    # out_ref   : (1, tp) f32 lane-dense output row
    x = coords_ref[0:1, :]          # (1, tp)
    y = coords_ref[1:2, :]
    z = coords_ref[2:3, :]

    def cont_index(c, size):
        # align_corners=False unnormalization:  t = ((c + 1) * size - 1) / 2
        return ((c + 1.0) * size - 1.0) * 0.5

    ix = cont_index(x, Wv)          # (1, tp)
    iy = cont_index(y, Hv)
    iz = cont_index(z, Dv)

    # Tent weights: weight of voxel i for continuous index t is
    # max(0, 1 - |i - t|) — identical to grid_sample's trilinear weights with
    # padding_mode='zeros' (out-of-range neighbours contribute 0).
    Wd = jnp.maximum(1.0 - jnp.abs(didx_ref[...] - iz), 0.0)   # (Dv, tp)
    Wh = jnp.maximum(1.0 - jnp.abs(hidx_ref[...] - iy), 0.0)   # (Hv, tp)
    Ww = jnp.maximum(1.0 - jnp.abs(widx_ref[...] - ix), 0.0)   # (Wv, tp)

    # Expand Wd / Wh to the combined (d,h) axis on the (idle) MXU via constant
    # replication matrices, then one elementwise multiply at (Dv*Hv, tp).
    Wd_rep = jnp.dot(rd_ref[...], Wd, preferred_element_type=jnp.float32)  # (Dv*Hv, tp)
    Wh_rep = jnp.dot(rh_ref[...], Wh, preferred_element_type=jnp.float32)  # (Dv*Hv, tp)
    Wdh = Wd_rep * Wh_rep                                                  # (Dv*Hv, tp)

    # MXU: contract the dh axis (K = Dv*Hv).
    # G1[w, p] = sum_dh grid[d, h, w] * Wdh[dh, p]
    G1 = jnp.dot(grid_ref[...], Wdh,
                 preferred_element_type=jnp.float32)                       # (Wv, tp)

    # Residual reduce over only Wv sublane rows -> lane-dense (1, tp) row.
    out_ref[...] = jnp.sum(Ww * G1, axis=0, keepdims=True)


def _round_up(x, m):
    return ((x + m - 1) // m) * m


def _num_tensorcores_per_chip():
    """2 on v7x (megacore grid sharding), else 1. Detection failure -> 1."""
    try:
        kind = (jax.devices()[0].device_kind or "").lower()
    except Exception:
        return 1
    if "v7" in kind or "7x" in kind:
        return 2
    return 1


def grid_sample_trilinear(occupancy_grid, ray_bin_centers, *, tile=None):
    """Pallas equivalent of F.grid_sample(occ, coords, mode='bilinear',
    align_corners=False, padding_mode='zeros') for 5-D inputs, reshaped to
    (n_rays, n_bins)."""
    _, _, Dv, Hv, Wv = occupancy_grid.shape
    n_rays, n_bins, _ = ray_bin_centers.shape
    P = n_rays * n_bins

    n_cores = _num_tensorcores_per_chip()
    if tile is None:
        # One big tile per TensorCore when possible; splitting the grid on a
        # 1-TC chip only adds per-step overhead.
        per_core = -(-P // n_cores)
        tile = max(128, min(_MAX_TILE, _round_up(per_core, 128)))
    # Keep num_tiles a multiple of n_cores so both v7x cores stay balanced.
    P_pad = _round_up(P, tile * n_cores)
    num_tiles = P_pad // tile

    # --- glue (plain JAX / numpy, one-time) --------------------------------
    # grid_w_dh[w, d*Hv + h] = grid[d, h, w]
    grid_w_dh = jnp.transpose(
        occupancy_grid.astype(jnp.float32).reshape(Dv * Hv, Wv))     # (Wv, Dv*Hv)
    coords_t = jnp.transpose(
        ray_bin_centers.astype(jnp.float32).reshape(P, 3))           # (3, P)
    if P_pad != P:
        coords_t = jnp.pad(coords_t, ((0, 0), (0, P_pad - P)))

    # Shape-only constants, hoisted out of the per-step VPU stream.
    didx = jnp.asarray(np.arange(Dv, dtype=np.float32).reshape(Dv, 1))
    hidx = jnp.asarray(np.arange(Hv, dtype=np.float32).reshape(Hv, 1))
    widx = jnp.asarray(np.arange(Wv, dtype=np.float32).reshape(Wv, 1))
    dh = np.arange(Dv * Hv)
    rd_np = np.zeros((Dv * Hv, Dv), np.float32)
    rd_np[dh, dh // Hv] = 1.0
    rh_np = np.zeros((Dv * Hv, Hv), np.float32)
    rh_np[dh, dh % Hv] = 1.0
    Rd = jnp.asarray(rd_np)
    Rh = jnp.asarray(rh_np)

    kernel = functools.partial(_trilinear_kernel, Dv=Dv, Hv=Hv, Wv=Wv)
    out = pl.pallas_call(
        kernel,
        out_shape=jax.ShapeDtypeStruct((num_tiles, tile), jnp.float32),
        grid=(num_tiles,),
        in_specs=[
            pl.BlockSpec((Wv, Dv * Hv), lambda i: (0, 0)),   # whole grid, resident
            pl.BlockSpec((3, tile), lambda i: (0, i)),       # coord tile
            pl.BlockSpec((Dv, 1), lambda i: (0, 0)),         # d index column
            pl.BlockSpec((Hv, 1), lambda i: (0, 0)),         # h index column
            pl.BlockSpec((Wv, 1), lambda i: (0, 0)),         # w index column
            pl.BlockSpec((Dv * Hv, Dv), lambda i: (0, 0)),   # Rd replication const
            pl.BlockSpec((Dv * Hv, Hv), lambda i: (0, 0)),   # Rh replication const
        ],
        out_specs=pl.BlockSpec((1, tile), lambda i: (i, 0)),  # lane-dense row
        compiler_params=pltpu.CompilerParams(
            dimension_semantics=("parallel",),
            vmem_limit_bytes=32 * 1024 * 1024),
    )(grid_w_dh, coords_t, didx, hidx, widx, Rd, Rh)

    return out.reshape(P_pad)[:P].reshape(n_rays, n_bins)


class OccupancyGridModel:
    """JAX/Pallas port of the PyTorch OccupancyGridModel."""

    def __init__(self, voxel_size):
        self.voxel_size = voxel_size
        # nn.Parameter(torch.zeros(1, 1, V, V, V))
        self.occupancy_grid = jnp.zeros(
            (1, 1, voxel_size, voxel_size, voxel_size), jnp.float32)

    def forward(self):
        return self.occupancy_grid

    def __call__(self):
        return self.forward()

    @staticmethod
    def interpolate(occupancy_grid, ray_bin_centers, mode='bilinear'):
        assert mode == 'bilinear', "only trilinear ('bilinear') mode supported"
        return grid_sample_trilinear(occupancy_grid, ray_bin_centers)


def _reference_trilinear(occupancy_grid, ray_bin_centers):
    """Pure-JAX reference matching torch.nn.functional.grid_sample semantics."""
    _, _, Dv, Hv, Wv = occupancy_grid.shape
    g = occupancy_grid[0, 0]
    n_rays, n_bins, _ = ray_bin_centers.shape
    c = ray_bin_centers.reshape(-1, 3).astype(jnp.float32)

    def unnorm(v, size):
        return ((v + 1.0) * size - 1.0) * 0.5

    ix, iy, iz = unnorm(c[:, 0], Wv), unnorm(c[:, 1], Hv), unnorm(c[:, 2], Dv)
    x0 = jnp.floor(ix).astype(jnp.int32); x1 = x0 + 1
    y0 = jnp.floor(iy).astype(jnp.int32); y1 = y0 + 1
    z0 = jnp.floor(iz).astype(jnp.int32); z1 = z0 + 1
    wx1 = ix - x0; wx0 = 1.0 - wx1
    wy1 = iy - y0; wy0 = 1.0 - wy1
    wz1 = iz - z0; wz0 = 1.0 - wz1

    def fetch(zi, yi, xi):
        inb = ((zi >= 0) & (zi < Dv) & (yi >= 0) & (yi < Hv)
               & (xi >= 0) & (xi < Wv))
        zc = jnp.clip(zi, 0, Dv - 1)
        yc = jnp.clip(yi, 0, Hv - 1)
        xc = jnp.clip(xi, 0, Wv - 1)
        return jnp.where(inb, g[zc, yc, xc], 0.0)

    out = (fetch(z0, y0, x0) * wz0 * wy0 * wx0 +
           fetch(z0, y0, x1) * wz0 * wy0 * wx1 +
           fetch(z0, y1, x0) * wz0 * wy1 * wx0 +
           fetch(z0, y1, x1) * wz0 * wy1 * wx1 +
           fetch(z1, y0, x0) * wz1 * wy0 * wx0 +
           fetch(z1, y0, x1) * wz1 * wy0 * wx1 +
           fetch(z1, y1, x0) * wz1 * wy1 * wx0 +
           fetch(z1, y1, x1) * wz1 * wy1 * wx1)
    return out.reshape(n_rays, n_bins)


if __name__ == "__main__":
    voxel_size = 16

    model = OccupancyGridModel(voxel_size)
    occ_param = model.forward()                       # (1,1,16,16,16) zeros
    assert occ_param.shape == (1, 1, voxel_size, voxel_size, voxel_size)

    # interpolate() is a staticmethod taking the grid explicitly, so use a
    # deterministic non-zero grid to actually exercise the kernel.
    key = jax.random.PRNGKey(0)
    kg, kc, kc2, kc3 = jax.random.split(key, 4)
    occ_grid = jax.random.normal(
        kg, (1, 1, voxel_size, voxel_size, voxel_size), jnp.float32)

    # Case 1: small (single-tile) workload.
    n_rays, n_bins = 16, 8
    rbc = jax.random.uniform(
        kc, (n_rays, n_bins, 3), jnp.float32, minval=-1.2, maxval=1.2)
    bin_logits = jax.block_until_ready(
        OccupancyGridModel.interpolate(occ_grid, rbc))
    assert bin_logits.shape == (n_rays, n_bins)
    ref = _reference_trilinear(occ_grid, rbc)
    err = float(jnp.max(jnp.abs(bin_logits - ref)))
    assert err < 1e-4, f"max abs error {err}"

    # Case 2: larger workload exercising the big-tile / lane-dense path.
    n_rays2, n_bins2 = 64, 32
    rbc2 = jax.random.uniform(
        kc2, (n_rays2, n_bins2, 3), jnp.float32, minval=-1.2, maxval=1.2)
    bin_logits2 = jax.block_until_ready(
        OccupancyGridModel.interpolate(occ_grid, rbc2))
    assert bin_logits2.shape == (n_rays2, n_bins2)
    ref2 = _reference_trilinear(occ_grid, rbc2)
    err2 = float(jnp.max(jnp.abs(bin_logits2 - ref2)))
    assert err2 < 1e-4, f"max abs error {err2}"

    # Case 3: P not a multiple of 128 -> exercises the pad/slice path.
    n_rays3, n_bins3 = 7, 11
    rbc3 = jax.random.uniform(
        kc3, (n_rays3, n_bins3, 3), jnp.float32, minval=-1.2, maxval=1.2)
    bin_logits3 = jax.block_until_ready(
        OccupancyGridModel.interpolate(occ_grid, rbc3))
    assert bin_logits3.shape == (n_rays3, n_bins3)
    ref3 = _reference_trilinear(occ_grid, rbc3)
    err3 = float(jnp.max(jnp.abs(bin_logits3 - ref3)))
    assert err3 < 1e-4, f"max abs error {err3}"

    print("KERNEL_OK")
</pallas_src>

<mosaic_0001>
module attributes {stable_mosaic.version = 11 : i64} {
  func.func @_trilinear_kernel(%arg0: i32, %arg1: memref<16x256xf32, #tpu.memory_space<vmem>>, %arg2: memref<3x128xf32, #tpu.memory_space<vmem>>, %arg3: memref<16x1xf32, #tpu.memory_space<vmem>>, %arg4: memref<16x1xf32, #tpu.memory_space<vmem>>, %arg5: memref<16x1xf32, #tpu.memory_space<vmem>>, %arg6: memref<256x16xf32, #tpu.memory_space<vmem>>, %arg7: memref<256x16xf32, #tpu.memory_space<vmem>>, %arg8: memref<1x128xf32, #tpu.memory_space<vmem>>) attributes {dimension_semantics = [#tpu.dimension_semantics<parallel>], iteration_bounds = array<i64: 1>, scalar_prefetch = 0 : i64, scratch_operands = 0 : i64, tpu.core_type = #tpu.core_type<tc>, window_params = [{pipeline_mode = #tpu.pipeline_mode<synchronous>, transform_indices = @transform_0, window_bounds = array<i64: 16, 256>}, {transform_indices = @transform_1, window_bounds = array<i64: 3, 128>}, {pipeline_mode = #tpu.pipeline_mode<synchronous>, transform_indices = @transform_2, window_bounds = array<i64: 16, 1>}, {pipeline_mode = #tpu.pipeline_mode<synchronous>, transform_indices = @transform_3, window_bounds = array<i64: 16, 1>}, {pipeline_mode = #tpu.pipeline_mode<synchronous>, transform_indices = @transform_4, window_bounds = array<i64: 16, 1>}, {pipeline_mode = #tpu.pipeline_mode<synchronous>, transform_indices = @transform_5, window_bounds = array<i64: 256, 16>}, {pipeline_mode = #tpu.pipeline_mode<synchronous>, transform_indices = @transform_6, window_bounds = array<i64: 256, 16>}, {transform_indices = @transform_7, window_bounds = array<i64: 1, 128>}]} {
    %c0 = arith.constant 0 : index
    %c0_0 = arith.constant 0 : index
    %0 = vector.load %arg2[%c0, %c0_0] : memref<3x128xf32, #tpu.memory_space<vmem>>, vector<1x128xf32>
    %c1 = arith.constant 1 : index
    %c0_1 = arith.constant 0 : index
    %1 = vector.load %arg2[%c1, %c0_1] : memref<3x128xf32, #tpu.memory_space<vmem>>, vector<1x128xf32>
    %c2 = arith.constant 2 : index
    %c0_2 = arith.constant 0 : index
    %2 = vector.load %arg2[%c2, %c0_2] : memref<3x128xf32, #tpu.memory_space<vmem>>, vector<1x128xf32>
    %cst = arith.constant 1.000000e+00 : f32
    %3 = vector.broadcast %cst : f32 to vector<1x128xf32>
    %4 = arith.addf %0, %3 : vector<1x128xf32>
    %cst_3 = arith.constant 1.600000e+01 : f32
    %5 = vector.broadcast %cst_3 : f32 to vector<1x128xf32>
    %6 = arith.mulf %4, %5 : vector<1x128xf32>
    %cst_4 = arith.constant 1.000000e+00 : f32
    %7 = vector.broadcast %cst_4 : f32 to vector<1x128xf32>
    %8 = arith.subf %6, %7 : vector<1x128xf32>
    %cst_5 = arith.constant 5.000000e-01 : f32
    %9 = vector.broadcast %cst_5 : f32 to vector<1x128xf32>
    %10 = arith.mulf %8, %9 : vector<1x128xf32>
    %cst_6 = arith.constant 1.000000e+00 : f32
    %11 = vector.broadcast %cst_6 : f32 to vector<1x128xf32>
    %12 = arith.addf %1, %11 : vector<1x128xf32>
    %cst_7 = arith.constant 1.600000e+01 : f32
    %13 = vector.broadcast %cst_7 : f32 to vector<1x128xf32>
    %14 = arith.mulf %12, %13 : vector<1x128xf32>
    %cst_8 = arith.constant 1.000000e+00 : f32
    %15 = vector.broadcast %cst_8 : f32 to vector<1x128xf32>
    %16 = arith.subf %14, %15 : vector<1x128xf32>
    %cst_9 = arith.constant 5.000000e-01 : f32
    %17 = vector.broadcast %cst_9 : f32 to vector<1x128xf32>
    %18 = arith.mulf %16, %17 : vector<1x128xf32>
    %cst_10 = arith.constant 1.000000e+00 : f32
    %19 = vector.broadcast %cst_10 : f32 to vector<1x128xf32>
    %20 = arith.addf %2, %19 : vector<1x128xf32>
    %cst_11 = arith.constant 1.600000e+01 : f32
    %21 = vector.broadcast %cst_11 : f32 to vector<1x128xf32>
    %22 = arith.mulf %20, %21 : vector<1x128xf32>
    %cst_12 = arith.constant 1.000000e+00 : f32
    %23 = vector.broadcast %cst_12 : f32 to vector<1x128xf32>
    %24 = arith.subf %22, %23 : vector<1x128xf32>
    %cst_13 = arith.constant 5.000000e-01 : f32
    %25 = vector.broadcast %cst_13 : f32 to vector<1x128xf32>
    %26 = arith.mulf %24, %25 : vector<1x128xf32>
    %c0_14 = arith.constant 0 : index
    %c0_15 = arith.constant 0 : index
    %27 = vector.load %arg3[%c0_14, %c0_15] : memref<16x1xf32, #tpu.memory_space<vmem>>, vector<16x1xf32>
    %28 = vector.broadcast %27 : vector<16x1xf32> to vector<16x128xf32>
    %29 = vector.broadcast %26 : vector<1x128xf32> to vector<16x128xf32>
    %30 = arith.subf %28, %29 : vector<16x128xf32>
    %31 = math.absf %30 : vector<16x128xf32>
    %cst_16 = arith.constant 1.000000e+00 : f32
    %32 = vector.broadcast %cst_16 : f32 to vector<16x128xf32>
    %33 = arith.subf %32, %31 : vector<16x128xf32>
    %cst_17 = arith.constant 0.000000e+00 : f32
    %34 = vector.broadcast %cst_17 : f32 to vector<16x128xf32>
    %35 = arith.maximumf %33, %34 : vector<16x128xf32>
    %c0_18 = arith.constant 0 : index
    %c0_19 = arith.constant 0 : index
    %36 = vector.load %arg4[%c0_18, %c0_19] : memref<16x1xf32, #tpu.memory_space<vmem>>, vector<16x1xf32>
    %37 = vector.broadcast %36 : vector<16x1xf32> to vector<16x128xf32>
    %38 = vector.broadcast %18 : vector<1x128xf32> to vector<16x128xf32>
    %39 = arith.subf %37, %38 : vector<16x128xf32>
    %40 = math.absf %39 : vector<16x128xf32>
    %cst_20 = arith.constant 1.000000e+00 : f32
    %41 = vector.broadcast %cst_20 : f32 to vector<16x128xf32>
    %42 = arith.subf %41, %40 : vector<16x128xf32>
    %cst_21 = arith.constant 0.000000e+00 : f32
    %43 = vector.broadcast %cst_21 : f32 to vector<16x128xf32>
    %44 = arith.maximumf %42, %43 : vector<16x128xf32>
    %c0_22 = arith.constant 0 : index
    %c0_23 = arith.constant 0 : index
    %45 = vector.load %arg5[%c0_22, %c0_23] : memref<16x1xf32, #tpu.memory_space<vmem>>, vector<16x1xf32>
    %46 = vector.broadcast %45 : vector<16x1xf32> to vector<16x128xf32>
    %47 = vector.broadcast %10 : vector<1x128xf32> to vector<16x128xf32>
    %48 = arith.subf %46, %47 : vector<16x128xf32>
    %49 = math.absf %48 : vector<16x128xf32>
    %cst_24 = arith.constant 1.000000e+00 : f32
    %50 = vector.broadcast %cst_24 : f32 to vector<16x128xf32>
    %51 = arith.subf %50, %49 : vector<16x128xf32>
    %cst_25 = arith.constant 0.000000e+00 : f32
    %52 = vector.broadcast %cst_25 : f32 to vector<16x128xf32>
    %53 = arith.maximumf %51, %52 : vector<16x128xf32>
    %c0_26 = arith.constant 0 : index
    %c0_27 = arith.constant 0 : index
    %54 = vector.load %arg6[%c0_26, %c0_27] : memref<256x16xf32, #tpu.memory_space<vmem>>, vector<256x16xf32>
    %cst_28 = arith.constant dense<0.000000e+00> : vector<256x128xf32>
    %55 = tpu.matmul %54, %35, %cst_28 {dimension_numbers = #tpu.dot_dimension_numbers<[1], [0], [0], [1], [0, 0, 1, 1], [], []>} : vector<256x16xf32>, vector<16x128xf32>, vector<256x128xf32> -> vector<256x128xf32>
    %c0_29 = arith.constant 0 : index
    %c0_30 = arith.constant 0 : index
    %56 = vector.load %arg7[%c0_29, %c0_30] : memref<256x16xf32, #tpu.memory_space<vmem>>, vector<256x16xf32>
    %cst_31 = arith.constant dense<0.000000e+00> : vector<256x128xf32>
    %57 = tpu.matmul %56, %44, %cst_31 {dimension_numbers = #tpu.dot_dimension_numbers<[1], [0], [0], [1], [0, 0, 1, 1], [], []>} : vector<256x16xf32>, vector<16x128xf32>, vector<256x128xf32> -> vector<256x128xf32>
    %58 = arith.mulf %55, %57 : vector<256x128xf32>
    %c0_32 = arith.constant 0 : index
    %c0_33 = arith.constant 0 : index
    %59 = vector.load %arg1[%c0_32, %c0_33] : memref<16x256xf32, #tpu.memory_space<vmem>>, vector<16x256xf32>
    %cst_34 = arith.constant dense<0.000000e+00> : vector<16x128xf32>
    %60 = tpu.matmul %59, %58, %cst_34 {dimension_numbers = #tpu.dot_dimension_numbers<[1], [0], [0], [1], [0, 0, 1, 1], [], []>} : vector<16x256xf32>, vector<256x128xf32>, vector<16x128xf32> -> vector<16x128xf32>
    %61 = arith.mulf %53, %60 : vector<16x128xf32>
    %cst_35 = arith.constant dense<0.000000e+00> : vector<128xf32>
    %62 = vector.multi_reduction <add>, %61, %cst_35 [0] : vector<16x128xf32> to vector<128xf32>
    %63 = vector.shape_cast %62 : vector<128xf32> to vector<1x128xf32>
    %c0_36 = arith.constant 0 : index
    %c0_37 = arith.constant 0 : index
    %64 = vector.load %arg8[%c0_36, %c0_37] : memref<1x128xf32, #tpu.memory_space<vmem>>, vector<1x128xf32>
    tpu.vector_store %arg8[%c0_36, %c0_37], %63 {strides = array<i32>} : memref<1x128xf32, #tpu.memory_space<vmem>>, vector<1x128xf32>,
    return
  }
  func.func @transform_0(%arg0: i32) -> (i32, i32) {
    %c0_i32 = arith.constant 0 : i32
    %c0_i32_0 = arith.constant 0 : i32
    %c0_i32_1 = arith.constant 0 : i32
    return %c0_i32, %c0_i32_0 : i32, i32
  }
  func.func @transform_1(%arg0: i32) -> (i32, i32) {
    %c0_i32 = arith.constant 0 : i32
    %c0_i32_0 = arith.constant 0 : i32
    return %c0_i32, %arg0 : i32, i32
  }
  func.func @transform_2(%arg0: i32) -> (i32, i32) {
    %c0_i32 = arith.constant 0 : i32
    %c0_i32_0 = arith.constant 0 : i32
    %c0_i32_1 = arith.constant 0 : i32
    return %c0_i32, %c0_i32_0 : i32, i32
  }
  func.func @transform_3(%arg0: i32) -> (i32, i32) {
    %c0_i32 = arith.constant 0 : i32
    %c0_i32_0 = arith.constant 0 : i32
    %c0_i32_1 = arith.constant 0 : i32
    return %c0_i32, %c0_i32_0 : i32, i32
  }
  func.func @transform_4(%arg0: i32) -> (i32, i32) {
    %c0_i32 = arith.constant 0 : i32
    %c0_i32_0 = arith.constant 0 : i32
    %c0_i32_1 = arith.constant 0 : i32
    return %c0_i32, %c0_i32_0 : i32, i32
  }
  func.func @transform_5(%arg0: i32) -> (i32, i32) {
    %c0_i32 = arith.constant 0 : i32
    %c0_i32_0 = arith.constant 0 : i32
    %c0_i32_1 = arith.constant 0 : i32
    return %c0_i32, %c0_i32_0 : i32, i32
  }
  func.func @transform_6(%arg0: i32) -> (i32, i32) {
    %c0_i32 = arith.constant 0 : i32
    %c0_i32_0 = arith.constant 0 : i32
    %c0_i32_1 = arith.constant 0 : i32
    return %c0_i32, %c0_i32_0 : i32, i32
  }
  func.func @transform_7(%arg0: i32) -> (i32, i32) {
    %c0_i32 = arith.constant 0 : i32
    %c0_i32_0 = arith.constant 0 : i32
    return %arg0, %c0_i32 : i32, i32
  }
}

</mosaic_0001>

<llo_original>
// kernel: tpu_custom_call.1
$region0: #{tpu_custom_call.1}
  #allocation0 [shape = 'u32[]', space=smem, size = 0x4, offset = 0x4, fixed_abs, tag = 'smem constant byte address 0x4 - core index']
  #allocation1 [shape = 'u32[144,128]{1,0:T(1,128)}', space=vmem, size = 0x12000, scoped, tag = 'internal scratch']
  %s0 = inlined_call_operand.vmem [shape: f32[16,256], index: 0, kind: input, shape index: {}]
  %s1 = inlined_call_operand.vmem [shape: f32[3,128], index: 1, kind: input, shape index: {}]
  %s2 = inlined_call_operand.vmem [shape: f32[16,1], index: 2, kind: input, shape index: {}]
  %s3 = inlined_call_operand.vmem [shape: f32[16,1], index: 3, kind: input, shape index: {}]
  %s4 = inlined_call_operand.vmem [shape: f32[16,1], index: 4, kind: input, shape index: {}]
  %s5 = inlined_call_operand.vmem [shape: f32[256,16], index: 5, kind: input, shape index: {}]
  %s6 = inlined_call_operand.vmem [shape: f32[256,16], index: 6, kind: input, shape index: {}]
  %s7 = inlined_call_operand.hbm [shape: f32[1,128], index: 7, kind: output, shape index: {}]
  %s8 = sld [smem:[#allocation0]]
  $region38: #{tpu_custom_call.1} parent=0
    _
  %s10 = ssub.s32 1, %s8
  %s11 = scalar_select 0, %s10, %s8
  $region1: #{tpu_custom_call.1} parent=0
    #allocation2 [shape = 'u8[512]{0}', space=vmem, size = 0x400, scoped, tag = 'output window, operand 0, single buffered']
    #allocation3 [shape = 's32[1]{0}', space=sflag, size = 0x4, scoped, tag = 'scoped memory for tpu_custom_call.1']
    %12 = vsyncpa [#allocation3], 0
    // Predicated region
    $region2: #{tpu_custom_call.1} parent=1 // pred_check
      _
    $region3: #{tpu_custom_call.1} parent=1 // pred_check_branch
      %14 = sbr.rel (0) target = $region5
    $region4: #{tpu_custom_call.1} parent=1 // pred_region
      _
    $region5: #{tpu_custom_call.1} parent=1 // pred_fallthru
      _
    // Predicated region
    $region6: #{tpu_custom_call.1} parent=1 // pred_check
      _
    $region7: #{tpu_custom_call.1} parent=1 // pred_check_branch
      %16 = sbr.rel (0) target = $region9
    $region8: #{tpu_custom_call.1} parent=1 // pred_region
      _
    $region9: #{tpu_custom_call.1} parent=1 // pred_fallthru
      _
    // Predicated region
    $region10: #{tpu_custom_call.1} parent=1 // pred_check
      _
    $region11: #{tpu_custom_call.1} parent=1 // pred_check_branch
      %18 = sbr.rel (0) target = $region13
    $region12: #{tpu_custom_call.1} parent=1 // pred_region
      _
    $region13: #{tpu_custom_call.1} parent=1 // pred_fallthru
      _
    // Predicated region
    $region14: #{tpu_custom_call.1} parent=1 // pred_check
      _
    $region15: #{tpu_custom_call.1} parent=1 // pred_check_branch
      %20 = sbr.rel (0) target = $region17
    $region16: #{tpu_custom_call.1} parent=1 // pred_region
      _
    $region17: #{tpu_custom_call.1} parent=1 // pred_fallthru
      _
    // Predicated region
    $region18: #{tpu_custom_call.1} parent=1 // pred_check
      _
    $region19: #{tpu_custom_call.1} parent=1 // pred_check_branch
      %22 = sbr.rel (0) target = $region21
    $region20: #{tpu_custom_call.1} parent=1 // pred_region
      _
    $region21: #{tpu_custom_call.1} parent=1 // pred_fallthru
      _
    // Predicated region
    $region22: #{tpu_custom_call.1} parent=1 // pred_check
      _
    $region23: #{tpu_custom_call.1} parent=1 // pred_check_branch
      %24 = sbr.rel (0) target = $region25
    $region24: #{tpu_custom_call.1} parent=1 // pred_region
      _
    $region25: #{tpu_custom_call.1} parent=1 // pred_fallthru
      _
    // Predicated region
    $region26: #{tpu_custom_call.1} parent=1 // pred_check
      _
    $region27: #{tpu_custom_call.1} parent=1 // pred_check_branch
      %26 = sbr.rel (0) target = $region29
    $region28: #{tpu_custom_call.1} parent=1 // pred_region
      _
    $region29: #{tpu_custom_call.1} parent=1 // pred_fallthru
      _
    %v27 = vld [vmem:[%s1] sm:$0x1]
    %v28 = vld [vmem:[%s1 + $0x1] sm:$0x1]
    %v29 = vld [vmem:[%s1 + $0x2] sm:$0x1]
    %v30 = vadd.f32 %v27, 1.0
    %v31 = vmul.f32 %v30, 16.0
    %v32 = vsub.f32 %v31, 1.0
    %v33 = vmul.f32 %v32, 0.5
    %v34 = vadd.f32 %v28, 1.0
    %v35 = vmul.f32 %v34, 16.0
    %v36 = vsub.f32 %v35, 1.0
    %v37 = vmul.f32 %v36, 0.5
    %v38 = vadd.f32 %v29, 1.0
    %v39 = vmul.f32 %v38, 16.0
    %v40 = vsub.f32 %v39, 1.0
    %v41 = vmul.f32 %v40, 0.5
    %v42 = vld [vmem:[%s2] sm:$0xff]
    %v43 = vld [vmem:[%s2 + $0x8] sm:$0xff]
    %45 = vset.pattern.permute.xlu0 0
    %46 = vperm.xlu0 %45, %v42
    %v47 = vpop.permute.xlu0 %46
    %50 = vset.pattern.permute.xlu0 0
    %51 = vperm.xlu0 %50, %v43
    %v52 = vpop.permute.xlu0 %51
    %v54 = vlaneseq
    %v55 = vshrl.u32 %v54, 7
    %v56 = vsub.s32 0, %v55
    %v57 = vrot.slane %v41, %v56
    %v58 = vsub.f32 %v47, %v57
    %v59 = vsub.f32 %v52, %v57
    %v60 = vand.u32 2147483647, %v58
    %v61 = vand.u32 2147483647, %v59
    %v62 = vsub.f32 1.0, %v60
    %v63 = vsub.f32 1.0, %v61
    %v64 = vmax.f32 %v62, 0.0
    %v65 = vmax.f32 %v63, 0.0
    %v66 = vld [vmem:[%s3] sm:$0xff]
    %v67 = vld [vmem:[%s3 + $0x8] sm:$0xff]
    %69 = vset.pattern.permute.xlu0 0
    %70 = vperm.xlu0 %69, %v66
    %v71 = vpop.permute.xlu0 %70
    %74 = vset.pattern.permute.xlu0 0
    %75 = vperm.xlu0 %74, %v67
    %v76 = vpop.permute.xlu0 %75
    %v78 = vlaneseq
    %v79 = vshrl.u32 %v78, 7
    %v80 = vsub.s32 0, %v79
    %v81 = vrot.slane %v37, %v80
    %v82 = vsub.f32 %v71, %v81
    %v83 = vsub.f32 %v76, %v81
    %v84 = vand.u32 2147483647, %v82
    %v85 = vand.u32 2147483647, %v83
    %v86 = vsub.f32 1.0, %v84
    %v87 = vsub.f32 1.0, %v85
    %v88 = vmax.f32 %v86, 0.0
    %v89 = vmax.f32 %v87, 0.0
    %v90 = vld [vmem:[%s4] sm:$0xff]
    %v91 = vld [vmem:[%s4 + $0x8] sm:$0xff]
    %93 = vset.pattern.permute.xlu0 0
    %94 = vperm.xlu0 %93, %v90
    %v95 = vpop.permute.xlu0 %94
    %98 = vset.pattern.permute.xlu0 0
    %99 = vperm.xlu0 %98, %v91
    %v100 = vpop.permute.xlu0 %99
    %v102 = vlaneseq
    %v103 = vshrl.u32 %v102, 7
    %v104 = vsub.s32 0, %v103
    %v105 = vrot.slane %v33, %v104
    %v106 = vsub.f32 %v95, %v105
    %v107 = vsub.f32 %v100, %v105
    %v108 = vand.u32 2147483647, %v106
    %v109 = vand.u32 2147483647, %v107
    %v110 = vsub.f32 1.0, %v108
    %v111 = vsub.f32 1.0, %v109
    %v112 = vmax.f32 %v110, 0.0
    %v113 = vmax.f32 %v111, 0.0
    %v114 = vld [vmem:[%s5] sm:$0xff]
    %v115 = vld [vmem:[%s5 + $0x8] sm:$0xff]
    %v116 = vld [vmem:[%s5 + $0x10] sm:$0xff]
    %v117 = vld [vmem:[%s5 + $0x18] sm:$0xff]
    %v118 = vld [vmem:[%s5 + $0x20] sm:$0xff]
    %v119 = vld [vmem:[%s5 + $0x28] sm:$0xff]
    %v120 = vld [vmem:[%s5 + $0x30] sm:$0xff]
    %v121 = vld [vmem:[%s5 + $0x38] sm:$0xff]
    %v122 = vld [vmem:[%s5 + $0x40] sm:$0xff]
    %v123 = vld [vmem:[%s5 + $0x48] sm:$0xff]
    %v124 = vld [vmem:[%s5 + $0x50] sm:$0xff]
    %v125 = vld [vmem:[%s5 + $0x58] sm:$0xff]
    %v126 = vld [vmem:[%s5 + $0x60] sm:$0xff]
    %v127 = vld [vmem:[%s5 + $0x68] sm:$0xff]
    %v128 = vld [vmem:[%s5 + $0x70] sm:$0xff]
    %v129 = vld [vmem:[%s5 + $0x78] sm:$0xff]
    %v130 = vld [vmem:[%s5 + $0x80] sm:$0xff]
    %v131 = vld [vmem:[%s5 + $0x88] sm:$0xff]
    %v132 = vld [vmem:[%s5 + $0x90] sm:$0xff]
    %v133 = vld [vmem:[%s5 + $0x98] sm:$0xff]
    %v134 = vld [vmem:[%s5 + $0xa0] sm:$0xff]
    %v135 = vld [vmem:[%s5 + $0xa8] sm:$0xff]
    %v136 = vld [vmem:[%s5 + $0xb0] sm:$0xff]
    %v137 = vld [vmem:[%s5 + $0xb8] sm:$0xff]
    %v138 = vld [vmem:[%s5 + $0xc0] sm:$0xff]
    %v139 = vld [vmem:[%s5 + $0xc8] sm:$0xff]
    %v140 = vld [vmem:[%s5 + $0xd0] sm:$0xff]
    %v141 = vld [vmem:[%s5 + $0xd8] sm:$0xff]
    %v142 = vld [vmem:[%s5 + $0xe0] sm:$0xff]
    %v143 = vld [vmem:[%s5 + $0xe8] sm:$0xff]
    %v144 = vld [vmem:[%s5 + $0xf0] sm:$0xff]
    %v145 = vld [vmem:[%s5 + $0xf8] sm:$0xff]
    %vm146 = vcmask 130048
    %v148 = vsel %vm146, %v114, 0
    %v151 = vsel %vm146, %v115, 0
    %v154 = vsel %vm146, %v116, 0
    %v157 = vsel %vm146, %v117, 0
    %v160 = vsel %vm146, %v118, 0
    %v163 = vsel %vm146, %v119, 0
    %v166 = vsel %vm146, %v120, 0
    %v169 = vsel %vm146, %v121, 0
    %v172 = vsel %vm146, %v122, 0
    %v175 = vsel %vm146, %v123, 0
    %v178 = vsel %vm146, %v124, 0
    %v181 = vsel %vm146, %v125, 0
    %v184 = vsel %vm146, %v126, 0
    %v187 = vsel %vm146, %v127, 0
    %v190 = vsel %vm146, %v128, 0
    %v193 = vsel %vm146, %v129, 0
    %v196 = vsel %vm146, %v130, 0
    %v199 = vsel %vm146, %v131, 0
    %v202 = vsel %vm146, %v132, 0
    %v205 = vsel %vm146, %v133, 0
    %v208 = vsel %vm146, %v134, 0
    %v211 = vsel %vm146, %v135, 0
    %v214 = vsel %vm146, %v136, 0
    %v217 = vsel %vm146, %v137, 0
    %v220 = vsel %vm146, %v138, 0
    %v223 = vsel %vm146, %v139, 0
    %v226 = vsel %vm146, %v140, 0
    %v229 = vsel %vm146, %v141, 0
    %v232 = vsel %vm146, %v142, 0
    %v235 = vsel %vm146, %v143, 0
    %v238 = vsel %vm146, %v144, 0
    %v241 = vsel %vm146, %v145, 0
    %243 = vmatprep.subr.mxu0 0.0
    %244 = vmatpush1.msra.mxu0 %v64
    %245 = vmatprep.subr.mxu0 0.0
    %246 = vmatpush1.msra.mxu0 %v65
    %247 = vmatprep.subr.mxu0 0.0
    %248 = vmatpush1.msra.mxu0 0.0
    %249 = vmatprep.subr.mxu0 0.0
    %250 = vmatpush1.msra.mxu0 0.0
    %251 = vmatprep.subr.mxu0 0.0
    %252 = vmatpush1.msra.mxu0 0.0
    %253 = vmatprep.subr.mxu0 0.0
    %254 = vmatpush1.msra.mxu0 0.0
    %255 = vmatprep.subr.mxu0 0.0
    %256 = vmatpush1.msra.mxu0 0.0
    %257 = vmatprep.subr.mxu0 0.0
    %258 = vmatpush1.msra.mxu0 0.0
    %259 = vmatprep.subr.mxu0 0.0
    %260 = vmatpush1.msra.mxu0 0.0
    %261 = vmatprep.subr.mxu0 0.0
    %262 = vmatpush1.msra.mxu0 0.0
    %263 = vmatprep.subr.mxu0 0.0
    %264 = vmatpush1.msra.mxu0 0.0
    %265 = vmatprep.subr.mxu0 0.0
    %266 = vmatpush1.msra.mxu0 0.0
    %267 = vmatprep.subr.mxu0 0.0
    %268 = vmatpush1.msra.mxu0 0.0
    %269 = vmatprep.subr.mxu0 0.0
    %270 = vmatpush1.msra.mxu0 0.0
    %271 = vmatprep.subr.mxu0 0.0
    %272 = vmatpush1.msra.mxu0 0.0
    %273 = vmatprep.subr.mxu0 0.0
    %274 = vmatpush1.msra.mxu0 0.0
    %275 = vmatprep.subr.mxu0 0.0
    %276 = vmatpush1.msra.mxu0 0.0
    %277 = vmatprep.subr.mxu0 0.0
    %278 = vmatpush1.msra.mxu0 0.0
    %279 = vmatprep.subr.mxu0 0.0
    %280 = vmatpush1.msra.mxu0 0.0
    %281 = vmatprep.subr.mxu0 0.0
    %282 = vmatpush1.msra.mxu0 0.0
    %283 = vmatprep.subr.mxu0 0.0
    %284 = vmatpush1.msra.mxu0 0.0
    %285 = vmatprep.subr.mxu0 0.0
    %286 = vmatpush1.msra.mxu0 0.0
    %287 = vmatprep.subr.mxu0 0.0
    %288 = vmatpush1.msra.mxu0 0.0
    %289 = vmatprep.subr.mxu0 0.0
    %290 = vmatpush1.msra.mxu0 0.0
    %291 = vmatprep.subr.mxu0 0.0
    %292 = vmatpush1.msra.mxu0 0.0
    %293 = vmatprep.subr.mxu0 0.0
    %294 = vmatpush1.msra.mxu0 0.0
    %295 = vmatprep.subr.mxu0 0.0
    %296 = vmatpush1.msra.mxu0 0.0
    %297 = vmatprep.subr.mxu0 0.0
    %298 = vmatpush1.msra.mxu0 0.0
    %299 = vmatprep.subr.mxu0 0.0
    %300 = vmatpush1.msra.mxu0 0.0
    %301 = vmatprep.subr.mxu0 0.0
    %302 = vmatpush1.msra.mxu0 0.0
    %303 = vmatprep.subr.mxu0 0.0
    %304 = vmatpush1.msra.mxu0 0.0
    %305 = vmatprep.subr.mxu0 0.0
    %306 = vmatpush1.msra.mxu0 0.0
    %307 = vmatprep.mubr.f32.mxu0 0.0
    %308 = vmatmul.mubr.f32.gmra.mrb[0].mxu0 %v148
    %v309 = vpop.f32.mrb[0].mxu0
    %v310 = vadd.f32 0.0, %v309
    %v311 = vpop.f32.mrb[0].mxu0
    %312 = vmatprep.mubr.f32.mxu0 0.0
    %313 = vmatmul.mubr.f32.gmra.mrb[0].mxu0 %v151
    %v314 = vpop.f32.mrb[0].mxu0
    %v315 = vadd.f32 0.0, %v314
    %v316 = vpop.f32.mrb[0].mxu0
    %317 = vmatprep.mubr.f32.mxu0 0.0
    %318 = vmatmul.mubr.f32.gmra.mrb[0].mxu0 %v154
    %v319 = vpop.f32.mrb[0].mxu0
    %v320 = vadd.f32 0.0, %v319
    %v321 = vpop.f32.mrb[0].mxu0
    %322 = vmatprep.mubr.f32.mxu0 0.0
    %323 = vmatmul.mubr.f32.gmra.mrb[0].mxu0 %v157
    %v324 = vpop.f32.mrb[0].mxu0
    %v325 = vadd.f32 0.0, %v324
    %v326 = vpop.f32.mrb[0].mxu0
    %327 = vmatprep.mubr.f32.mxu0 0.0
    %328 = vmatmul.mubr.f32.gmra.mrb[0].mxu0 %v160
    %v329 = vpop.f32.mrb[0].mxu0
    %v330 = vadd.f32 0.0, %v329
    %v331 = vpop.f32.mrb[0].mxu0
    %332 = vmatprep.mubr.f32.mxu0 0.0
    %333 = vmatmul.mubr.f32.gmra.mrb[0].mxu0 %v163
    %v334 = vpop.f32.mrb[0].mxu0
    %v335 = vadd.f32 0.0, %v334
    %v336 = vpop.f32.mrb[0].mxu0
    %337 = vmatprep.mubr.f32.mxu0 0.0
    %338 = vmatmul.mubr.f32.gmra.mrb[0].mxu0 %v166
    %v339 = vpop.f32.mrb[0].mxu0
    %v340 = vadd.f32 0.0, %v339
    %v341 = vpop.f32.mrb[0].mxu0
    %342 = vmatprep.mubr.f32.mxu0 0.0
    %343 = vmatmul.mubr.f32.gmra.mrb[0].mxu0 %v169
    %v344 = vpop.f32.mrb[0].mxu0
    %v345 = vadd.f32 0.0, %v344
    %v346 = vpop.f32.mrb[0].mxu0
    %347 = vmatprep.mubr.f32.mxu0 0.0
    %348 = vmatmul.mubr.f32.gmra.mrb[0].mxu0 %v172
    %v349 = vpop.f32.mrb[0].mxu0
    %v350 = vadd.f32 0.0, %v349
    %v351 = vpop.f32.mrb[0].mxu0
    %352 = vmatprep.mubr.f32.mxu0 0.0
    %353 = vmatmul.mubr.f32.gmra.mrb[0].mxu0 %v175
    %v354 = vpop.f32.mrb[0].mxu0
    %v355 = vadd.f32 0.0, %v354
    %v356 = vpop.f32.mrb[0].mxu0
    %357 = vmatprep.mubr.f32.mxu0 0.0
    %358 = vmatmul.mubr.f32.gmra.mrb[0].mxu0 %v178
    %v359 = vpop.f32.mrb[0].mxu0
    %v360 = vadd.f32 0.0, %v359
    %v361 = vpop.f32.mrb[0].mxu0
    %362 = vmatprep.mubr.f32.mxu0 0.0
    %363 = vmatmul.mubr.f32.gmra.mrb[0].mxu0 %v181
    %v364 = vpop.f32.mrb[0].mxu0
    %v365 = vadd.f32 0.0, %v364
    %v366 = vpop.f32.mrb[0].mxu0
    %367 = vmatprep.mubr.f32.mxu0 0.0
    %368 = vmatmul.mubr.f32.gmra.mrb[0].mxu0 %v184
    %v369 = vpop.f32.mrb[0].mxu0
    %v370 = vadd.f32 0.0, %v369
    %v371 = vpop.f32.mrb[0].mxu0
    %372 = vmatprep.mubr.f32.mxu0 0.0
    %373 = vmatmul.mubr.f32.gmra.mrb[0].mxu0 %v187
    %v374 = vpop.f32.mrb[0].mxu0
    %v375 = vadd.f32 0.0, %v374
    %v376 = vpop.f32.mrb[0].mxu0
    %377 = vmatprep.mubr.f32.mxu0 0.0
    %378 = vmatmul.mubr.f32.gmra.mrb[0].mxu0 %v190
    %v379 = vpop.f32.mrb[0].mxu0
    %v380 = vadd.f32 0.0, %v379
    %v381 = vpop.f32.mrb[0].mxu0
    %382 = vmatprep.mubr.f32.mxu0 0.0
    %383 = vmatmul.mubr.f32.gmra.mrb[0].mxu0 %v193
    %v384 = vpop.f32.mrb[0].mxu0
    %v385 = vadd.f32 0.0, %v384
    %v386 = vpop.f32.mrb[0].mxu0
    %387 = vmatprep.mubr.f32.mxu0 0.0
    %388 = vmatmul.mubr.f32.gmra.mrb[0].mxu0 %v196
    %v389 = vpop.f32.mrb[0].mxu0
    %v390 = vadd.f32 0.0, %v389
    %v391 = vpop.f32.mrb[0].mxu0
    %392 = vmatprep.mubr.f32.mxu0 0.0
    %393 = vmatmul.mubr.f32.gmra.mrb[0].mxu0 %v199
    %v394 = vpop.f32.mrb[0].mxu0
    %v395 = vadd.f32 0.0, %v394
    %v396 = vpop.f32.mrb[0].mxu0
    %397 = vmatprep.mubr.f32.mxu0 0.0
    %398 = vmatmul.mubr.f32.gmra.mrb[0].mxu0 %v202
    %v399 = vpop.f32.mrb[0].mxu0
    %v400 = vadd.f32 0.0, %v399
    %v401 = vpop.f32.mrb[0].mxu0
    %402 = vmatprep.mubr.f32.mxu0 0.0
    %403 = vmatmul.mubr.f32.gmra.mrb[0].mxu0 %v205
    %v404 = vpop.f32.mrb[0].mxu0
    %v405 = vadd.f32 0.0, %v404
    %v406 = vpop.f32.mrb[0].mxu0
    %407 = vmatprep.mubr.f32.mxu0 0.0
    %408 = vmatmul.mubr.f32.gmra.mrb[0].mxu0 %v208
    %v409 = vpop.f32.mrb[0].mxu0
    %v410 = vadd.f32 0.0, %v409
    %v411 = vpop.f32.mrb[0].mxu0
    %412 = vmatprep.mubr.f32.mxu0 0.0
    %413 = vmatmul.mubr.f32.gmra.mrb[0].mxu0 %v211
    %v414 = vpop.f32.mrb[0].mxu0
    %v415 = vadd.f32 0.0, %v414
    %v416 = vpop.f32.mrb[0].mxu0
    %417 = vmatprep.mubr.f32.mxu0 0.0
    %418 = vmatmul.mubr.f32.gmra.mrb[0].mxu0 %v214
    %v419 = vpop.f32.mrb[0].mxu0
    %v420 = vadd.f32 0.0, %v419
    %v421 = vpop.f32.mrb[0].mxu0
    %422 = vmatprep.mubr.f32.mxu0 0.0
    %423 = vmatmul.mubr.f32.gmra.mrb[0].mxu0 %v217
    %v424 = vpop.f32.mrb[0].mxu0
    %v425 = vadd.f32 0.0, %v424
    %v426 = vpop.f32.mrb[0].mxu0
    %427 = vmatprep.mubr.f32.mxu0 0.0
    %428 = vmatmul.mubr.f32.gmra.mrb[0].mxu0 %v220
    %v429 = vpop.f32.mrb[0].mxu0
    %v430 = vadd.f32 0.0, %v429
    %v431 = vpop.f32.mrb[0].mxu0
    %432 = vmatprep.mubr.f32.mxu0 0.0
    %433 = vmatmul.mubr.f32.gmra.mrb[0].mxu0 %v223
    %v434 = vpop.f32.mrb[0].mxu0
    %v435 = vadd.f32 0.0, %v434
    %v436 = vpop.f32.mrb[0].mxu0
    %437 = vmatprep.mubr.f32.mxu0 0.0
    %438 = vmatmul.mubr.f32.gmra.mrb[0].mxu0 %v226
    %v439 = vpop.f32.mrb[0].mxu0
    %v440 = vadd.f32 0.0, %v439
    %v441 = vpop.f32.mrb[0].mxu0
    %442 = vmatprep.mubr.f32.mxu0 0.0
    %443 = vmatmul.mubr.f32.gmra.mrb[0].mxu0 %v229
    %v444 = vpop.f32.mrb[0].mxu0
    %v445 = vadd.f32 0.0, %v444
    %v446 = vpop.f32.mrb[0].mxu0
    %447 = vmatprep.mubr.f32.mxu0 0.0
    %448 = vmatmul.mubr.f32.gmra.mrb[0].mxu0 %v232
    %v449 = vpop.f32.mrb[0].mxu0
    %v450 = vadd.f32 0.0, %v449
    %v451 = vpop.f32.mrb[0].mxu0
    %452 = vmatprep.mubr.f32.mxu0 0.0
    %453 = vmatmul.mubr.f32.gmra.mrb[0].mxu0 %v235
    %v454 = vpop.f32.mrb[0].mxu0
    %v455 = vadd.f32 0.0, %v454
    %v456 = vpop.f32.mrb[0].mxu0
    %457 = vmatprep.mubr.f32.mxu0 0.0
    %458 = vmatmul.mubr.f32.gmra.mrb[0].mxu0 %v238
    %v459 = vpop.f32.mrb[0].mxu0
    %v460 = vadd.f32 0.0, %v459
    %v461 = vpop.f32.mrb[0].mxu0
    %462 = vmatprep.mubr.f32.mxu0 0.0
    %463 = vmatmul.mubr.f32.gmra.mrb[0].mxu0 %v241
    %v464 = vpop.f32.mrb[0].mxu0
    %v465 = vadd.f32 0.0, %v464
    %v466 = vpop.f32.mrb[0].mxu0
    %467 = vdwg.mxu0
    %v468 = vld [vmem:[%s6] sm:$0xff]
    %v469 = vld [vmem:[%s6 + $0x8] sm:$0xff]
    %v470 = vld [vmem:[%s6 + $0x10] sm:$0xff]
    %v471 = vld [vmem:[%s6 + $0x18] sm:$0xff]
    %v472 = vld [vmem:[%s6 + $0x20] sm:$0xff]
    %v473 = vld [vmem:[%s6 + $0x28] sm:$0xff]
    %v474 = vld [vmem:[%s6 + $0x30] sm:$0xff]
    %v475 = vld [vmem:[%s6 + $0x38] sm:$0xff]
    %v476 = vld [vmem:[%s6 + $0x40] sm:$0xff]
    %v477 = vld [vmem:[%s6 + $0x48] sm:$0xff]
    %v478 = vld [vmem:[%s6 + $0x50] sm:$0xff]
    %v479 = vld [vmem:[%s6 + $0x58] sm:$0xff]
    %v480 = vld [vmem:[%s6 + $0x60] sm:$0xff]
    %v481 = vld [vmem:[%s6 + $0x68] sm:$0xff]
    %v482 = vld [vmem:[%s6 + $0x70] sm:$0xff]
    %v483 = vld [vmem:[%s6 + $0x78] sm:$0xff]
    %v484 = vld [vmem:[%s6 + $0x80] sm:$0xff]
    %v485 = vld [vmem:[%s6 + $0x88] sm:$0xff]
    %v486 = vld [vmem:[%s6 + $0x90] sm:$0xff]
    %v487 = vld [vmem:[%s6 + $0x98] sm:$0xff]
    %v488 = vld [vmem:[%s6 + $0xa0] sm:$0xff]
    %v489 = vld [vmem:[%s6 + $0xa8] sm:$0xff]
    %v490 = vld [vmem:[%s6 + $0xb0] sm:$0xff]
    %v491 = vld [vmem:[%s6 + $0xb8] sm:$0xff]
    %v492 = vld [vmem:[%s6 + $0xc0] sm:$0xff]
    %v493 = vld [vmem:[%s6 + $0xc8] sm:$0xff]
    %v494 = vld [vmem:[%s6 + $0xd0] sm:$0xff]
    %v495 = vld [vmem:[%s6 + $0xd8] sm:$0xff]
    %v496 = vld [vmem:[%s6 + $0xe0] sm:$0xff]
    %v497 = vld [vmem:[%s6 + $0xe8] sm:$0xff]
    %v498 = vld [vmem:[%s6 + $0xf0] sm:$0xff]
    %v499 = vld [vmem:[%s6 + $0xf8] sm:$0xff]
    %v501 = vsel %vm146, %v468, 0
    %v504 = vsel %vm146, %v469, 0
    %v507 = vsel %vm146, %v470, 0
    %v510 = vsel %vm146, %v471, 0
    %v513 = vsel %vm146, %v472, 0
    %v516 = vsel %vm146, %v473, 0
    %v519 = vsel %vm146, %v474, 0
    %v522 = vsel %vm146, %v475, 0
    %v525 = vsel %vm146, %v476, 0
    %v528 = vsel %vm146, %v477, 0
    %v531 = vsel %vm146, %v478, 0
    %v534 = vsel %vm146, %v479, 0
    %v537 = vsel %vm146, %v480, 0
    %v540 = vsel %vm146, %v481, 0
    %v543 = vsel %vm146, %v482, 0
    %v546 = vsel %vm146, %v483, 0
    %v549 = vsel %vm146, %v484, 0
    %v552 = vsel %vm146, %v485, 0
    %v555 = vsel %vm146, %v486, 0
    %v558 = vsel %vm146, %v487, 0
    %v561 = vsel %vm146, %v488, 0
    %v564 = vsel %vm146, %v489, 0
    %v567 = vsel %vm146, %v490, 0
    %v570 = vsel %vm146, %v491, 0
    %v573 = vsel %vm146, %v492, 0
    %v576 = vsel %vm146, %v493, 0
    %v579 = vsel %vm146, %v494, 0
    %v582 = vsel %vm146, %v495, 0
    %v585 = vsel %vm146, %v496, 0
    %v588 = vsel %vm146, %v497, 0
    %v591 = vsel %vm146, %v498, 0
    %v594 = vsel %vm146, %v499, 0
    %596 = vmatprep.subr.mxu0 0.0
    %597 = vmatpush1.msra.mxu0 %v88
    %598 = vmatprep.subr.mxu0 0.0
    %599 = vmatpush1.msra.mxu0 %v89
    %600 = vmatprep.subr.mxu0 0.0
    %601 = vmatpush1.msra.mxu0 0.0
    %602 = vmatprep.subr.mxu0 0.0
    %603 = vmatpush1.msra.mxu0 0.0
    %604 = vmatprep.subr.mxu0 0.0
    %605 = vmatpush1.msra.mxu0 0.0
    %606 = vmatprep.subr.mxu0 0.0
    %607 = vmatpush1.msra.mxu0 0.0
    %608 = vmatprep.subr.mxu0 0.0
    %609 = vmatpush1.msra.mxu0 0.0
    %610 = vmatprep.subr.mxu0 0.0
    %611 = vmatpush1.msra.mxu0 0.0
    %612 = vmatprep.subr.mxu0 0.0
    %613 = vmatpush1.msra.mxu0 0.0
    %614 = vmatprep.subr.mxu0 0.0
    %615 = vmatpush1.msra.mxu0 0.0
    %616 = vmatprep.subr.mxu0 0.0
    %617 = vmatpush1.msra.mxu0 0.0
    %618 = vmatprep.subr.mxu0 0.0
    %619 = vmatpush1.msra.mxu0 0.0
    %620 = vmatprep.subr.mxu0 0.0
    %621 = vmatpush1.msra.mxu0 0.0
    %622 = vmatprep.subr.mxu0 0.0
    %623 = vmatpush1.msra.mxu0 0.0
    %624 = vmatprep.subr.mxu0 0.0
    %625 = vmatpush1.msra.mxu0 0.0
    %626 = vmatprep.subr.mxu0 0.0
    %627 = vmatpush1.msra.mxu0 0.0
    %628 = vmatprep.subr.mxu0 0.0
    %629 = vmatpush1.msra.mxu0 0.0
    %630 = vmatprep.subr.mxu0 0.0
    %631 = vmatpush1.msra.mxu0 0.0
    %632 = vmatprep.subr.mxu0 0.0
    %633 = vmatpush1.msra.mxu0 0.0
    %634 = vmatprep.subr.mxu0 0.0
    %635 = vmatpush1.msra.mxu0 0.0
    %636 = vmatprep.subr.mxu0 0.0
    %637 = vmatpush1.msra.mxu0 0.0
    %638 = vmatprep.subr.mxu0 0.0
    %639 = vmatpush1.msra.mxu0 0.0
    %640 = vmatprep.subr.mxu0 0.0
    %641 = vmatpush1.msra.mxu0 0.0
    %642 = vmatprep.subr.mxu0 0.0
    %643 = vmatpush1.msra.mxu0 0.0
    %644 = vmatprep.subr.mxu0 0.0
    %645 = vmatpush1.msra.mxu0 0.0
    %646 = vmatprep.subr.mxu0 0.0
    %647 = vmatpush1.msra.mxu0 0.0
    %648 = vmatprep.subr.mxu0 0.0
    %649 = vmatpush1.msra.mxu0 0.0
    %650 = vmatprep.subr.mxu0 0.0
    %651 = vmatpush1.msra.mxu0 0.0
    %652 = vmatprep.subr.mxu0 0.0
    %653 = vmatpush1.msra.mxu0 0.0
    %654 = vmatprep.subr.mxu0 0.0
    %655 = vmatpush1.msra.mxu0 0.0
    %656 = vmatprep.subr.mxu0 0.0
    %657 = vmatpush1.msra.mxu0 0.0
    %658 = vmatprep.subr.mxu0 0.0
    %659 = vmatpush1.msra.mxu0 0.0
    %660 = vmatprep.mubr.f32.mxu0 0.0
    %661 = vmatmul.mubr.f32.gmra.mrb[0].mxu0 %v501
    %v662 = vpop.f32.mrb[0].mxu0
    %v663 = vadd.f32 0.0, %v662
    %v664 = vpop.f32.mrb[0].mxu0
    %665 = vmatprep.mubr.f32.mxu0 0.0
    %666 = vmatmul.mubr.f32.gmra.mrb[0].mxu0 %v504
    %v667 = vpop.f32.mrb[0].mxu0
    %v668 = vadd.f32 0.0, %v667
    %v669 = vpop.f32.mrb[0].mxu0
    %670 = vmatprep.mubr.f32.mxu0 0.0
    %671 = vmatmul.mubr.f32.gmra.mrb[0].mxu0 %v507
    %v672 = vpop.f32.mrb[0].mxu0
    %v673 = vadd.f32 0.0, %v672
    %v674 = vpop.f32.mrb[0].mxu0
    %675 = vmatprep.mubr.f32.mxu0 0.0
    %676 = vmatmul.mubr.f32.gmra.mrb[0].mxu0 %v510
    %v677 = vpop.f32.mrb[0].mxu0
    %v678 = vadd.f32 0.0, %v677
    %v679 = vpop.f32.mrb[0].mxu0
    %680 = vmatprep.mubr.f32.mxu0 0.0
    %681 = vmatmul.mubr.f32.gmra.mrb[0].mxu0 %v513
    %v682 = vpop.f32.mrb[0].mxu0
    %v683 = vadd.f32 0.0, %v682
    %v684 = vpop.f32.mrb[0].mxu0
    %685 = vmatprep.mubr.f32.mxu0 0.0
    %686 = vmatmul.mubr.f32.gmra.mrb[0].mxu0 %v516
    %v687 = vpop.f32.mrb[0].mxu0
    %v688 = vadd.f32 0.0, %v687
    %v689 = vpop.f32.mrb[0].mxu0
    %690 = vmatprep.mubr.f32.mxu0 0.0
    %691 = vmatmul.mubr.f32.gmra.mrb[0].mxu0 %v519
    %v692 = vpop.f32.mrb[0].mxu0
    %v693 = vadd.f32 0.0, %v692
    %v694 = vpop.f32.mrb[0].mxu0
    %695 = vmatprep.mubr.f32.mxu0 0.0
    %696 = vmatmul.mubr.f32.gmra.mrb[0].mxu0 %v522
    %v697 = vpop.f32.mrb[0].mxu0
    %v698 = vadd.f32 0.0, %v697
    %v699 = vpop.f32.mrb[0].mxu0
    %700 = vmatprep.mubr.f32.mxu0 0.0
    %701 = vmatmul.mubr.f32.gmra.mrb[0].mxu0 %v525
    %v702 = vpop.f32.mrb[0].mxu0
    %v703 = vadd.f32 0.0, %v702
    %v704 = vpop.f32.mrb[0].mxu0
    %705 = vmatprep.mubr.f32.mxu0 0.0
    %706 = vmatmul.mubr.f32.gmra.mrb[0].mxu0 %v528
    %v707 = vpop.f32.mrb[0].mxu0
    %v708 = vadd.f32 0.0, %v707
    %v709 = vpop.f32.mrb[0].mxu0
    %710 = vmatprep.mubr.f32.mxu0 0.0
    %711 = vmatmul.mubr.f32.gmra.mrb[0].mxu0 %v531
    %v712 = vpop.f32.mrb[0].mxu0
    %v713 = vadd.f32 0.0, %v712
    %v714 = vpop.f32.mrb[0].mxu0
    %715 = vmatprep.mubr.f32.mxu0 0.0
    %716 = vmatmul.mubr.f32.gmra.mrb[0].mxu0 %v534
    %v717 = vpop.f32.mrb[0].mxu0
    %v718 = vadd.f32 0.0, %v717
    %v719 = vpop.f32.mrb[0].mxu0
    %720 = vmatprep.mubr.f32.mxu0 0.0
    %721 = vmatmul.mubr.f32.gmra.mrb[0].mxu0 %v537
    %v722 = vpop.f32.mrb[0].mxu0
    %v723 = vadd.f32 0.0, %v722
    %v724 = vpop.f32.mrb[0].mxu0
    %725 = vmatprep.mubr.f32.mxu0 0.0
    %726 = vmatmul.mubr.f32.gmra.mrb[0].mxu0 %v540
    %v727 = vpop.f32.mrb[0].mxu0
    %v728 = vadd.f32 0.0, %v727
    %v729 = vpop.f32.mrb[0].mxu0
    %730 = vmatprep.mubr.f32.mxu0 0.0
    %731 = vmatmul.mubr.f32.gmra.mrb[0].mxu0 %v543
    %v732 = vpop.f32.mrb[0].mxu0
    %v733 = vadd.f32 0.0, %v732
    %v734 = vpop.f32.mrb[0].mxu0
    %735 = vmatprep.mubr.f32.mxu0 0.0
    %736 = vmatmul.mubr.f32.gmra.mrb[0].mxu0 %v546
    %v737 = vpop.f32.mrb[0].mxu0
    %v738 = vadd.f32 0.0, %v737
    %v739 = vpop.f32.mrb[0].mxu0
    %740 = vmatprep.mubr.f32.mxu0 0.0
    %741 = vmatmul.mubr.f32.gmra.mrb[0].mxu0 %v549
    %v742 = vpop.f32.mrb[0].mxu0
    %v743 = vadd.f32 0.0, %v742
    %v744 = vpop.f32.mrb[0].mxu0
    %745 = vmatprep.mubr.f32.mxu0 0.0
    %746 = vmatmul.mubr.f32.gmra.mrb[0].mxu0 %v552
    %v747 = vpop.f32.mrb[0].mxu0
    %v748 = vadd.f32 0.0, %v747
    %v749 = vpop.f32.mrb[0].mxu0
    %750 = vmatprep.mubr.f32.mxu0 0.0
    %751 = vmatmul.mubr.f32.gmra.mrb[0].mxu0 %v555
    %v752 = vpop.f32.mrb[0].mxu0
    %v753 = vadd.f32 0.0, %v752
    %v754 = vpop.f32.mrb[0].mxu0
    %755 = vmatprep.mubr.f32.mxu0 0.0
    %756 = vmatmul.mubr.f32.gmra.mrb[0].mxu0 %v558
    %v757 = vpop.f32.mrb[0].mxu0
    %v758 = vadd.f32 0.0, %v757
    %v759 = vpop.f32.mrb[0].mxu0
    %760 = vmatprep.mubr.f32.mxu0 0.0
    %761 = vmatmul.mubr.f32.gmra.mrb[0].mxu0 %v561
    %v762 = vpop.f32.mrb[0].mxu0
    %v763 = vadd.f32 0.0, %v762
    %v764 = vpop.f32.mrb[0].mxu0
    %765 = vmatprep.mubr.f32.mxu0 0.0
    %766 = vmatmul.mubr.f32.gmra.mrb[0].mxu0 %v564
    %v767 = vpop.f32.mrb[0].mxu0
    %v768 = vadd.f32 0.0, %v767
    %v769 = vpop.f32.mrb[0].mxu0
    %770 = vmatprep.mubr.f32.mxu0 0.0
    %771 = vmatmul.mubr.f32.gmra.mrb[0].mxu0 %v567
    %v772 = vpop.f32.mrb[0].mxu0
    %v773 = vadd.f32 0.0, %v772
    %v774 = vpop.f32.mrb[0].mxu0
    %775 = vmatprep.mubr.f32.mxu0 0.0
    %776 = vmatmul.mubr.f32.gmra.mrb[0].mxu0 %v570
    %v777 = vpop.f32.mrb[0].mxu0
    %v778 = vadd.f32 0.0, %v777
    %v779 = vpop.f32.mrb[0].mxu0
    %780 = vmatprep.mubr.f32.mxu0 0.0
    %781 = vmatmul.mubr.f32.gmra.mrb[0].mxu0 %v573
    %v782 = vpop.f32.mrb[0].mxu0
    %v783 = vadd.f32 0.0, %v782
    %v784 = vpop.f32.mrb[0].mxu0
    %785 = vmatprep.mubr.f32.mxu0 0.0
    %786 = vmatmul.mubr.f32.gmra.mrb[0].mxu0 %v576
    %v787 = vpop.f32.mrb[0].mxu0
    %v788 = vadd.f32 0.0, %v787
    %v789 = vpop.f32.mrb[0].mxu0
    %790 = vmatprep.mubr.f32.mxu0 0.0
    %791 = vmatmul.mubr.f32.gmra.mrb[0].mxu0 %v579
    %v792 = vpop.f32.mrb[0].mxu0
    %v793 = vadd.f32 0.0, %v792
    %v794 = vpop.f32.mrb[0].mxu0
    %795 = vmatprep.mubr.f32.mxu0 0.0
    %796 = vmatmul.mubr.f32.gmra.mrb[0].mxu0 %v582
    %v797 = vpop.f32.mrb[0].mxu0
    %v798 = vadd.f32 0.0, %v797
    %v799 = vpop.f32.mrb[0].mxu0
    %800 = vmatprep.mubr.f32.mxu0 0.0
    %801 = vmatmul.mubr.f32.gmra.mrb[0].mxu0 %v585
    %v802 = vpop.f32.mrb[0].mxu0
    %v803 = vadd.f32 0.0, %v802
    %v804 = vpop.f32.mrb[0].mxu0
    %805 = vmatprep.mubr.f32.mxu0 0.0
    %806 = vmatmul.mubr.f32.gmra.mrb[0].mxu0 %v588
    %v807 = vpop.f32.mrb[0].mxu0
    %v808 = vadd.f32 0.0, %v807
    %v809 = vpop.f32.mrb[0].mxu0
    %810 = vmatprep.mubr.f32.mxu0 0.0
    %811 = vmatmul.mubr.f32.gmra.mrb[0].mxu0 %v591
    %v812 = vpop.f32.mrb[0].mxu0
    %v813 = vadd.f32 0.0, %v812
    %v814 = vpop.f32.mrb[0].mxu0
    %815 = vmatprep.mubr.f32.mxu0 0.0
    %816 = vmatmul.mubr.f32.gmra.mrb[0].mxu0 %v594
    %v817 = vpop.f32.mrb[0].mxu0
    %v818 = vadd.f32 0.0, %v817
    %v819 = vpop.f32.mrb[0].mxu0
    %820 = vdwg.mxu0
    %v821 = vmul.f32 %v310, %v663
    %v822 = vmul.f32 %v315, %v668
    %v823 = vmul.f32 %v320, %v673
    %v824 = vmul.f32 %v325, %v678
    %v825 = vmul.f32 %v330, %v683
    %v826 = vmul.f32 %v335, %v688
    %v827 = vmul.f32 %v340, %v693
    %v828 = vmul.f32 %v345, %v698
    %v829 = vmul.f32 %v350, %v703
    %v830 = vmul.f32 %v355, %v708
    %v831 = vmul.f32 %v360, %v713
    %v832 = vmul.f32 %v365, %v718
    %v833 = vmul.f32 %v370, %v723
    %v834 = vmul.f32 %v375, %v728
    %v835 = vmul.f32 %v380, %v733
    %v836 = vmul.f32 %v385, %v738
    %v837 = vmul.f32 %v390, %v743
    %v838 = vmul.f32 %v395, %v748
    %v839 = vmul.f32 %v400, %v753
    %v840 = vmul.f32 %v405, %v758
    %v841 = vmul.f32 %v410, %v763
    %v842 = vmul.f32 %v415, %v768
    %v843 = vmul.f32 %v420, %v773
    %v844 = vmul.f32 %v425, %v778
    %v845 = vmul.f32 %v430, %v783
    %v846 = vmul.f32 %v435, %v788
    %v847 = vmul.f32 %v440, %v793
    %v848 = vmul.f32 %v445, %v798
    %v849 = vmul.f32 %v450, %v803
    %v850 = vmul.f32 %v455, %v808
    %v851 = vmul.f32 %v460, %v813
    %v852 = vmul.f32 %v465, %v818
    %v853 = vld [vmem:[%s0] sm:$0xff]
    %v854 = vld [vmem:[%s0 + $0x8] sm:$0xff]
    %v855 = vld [vmem:[%s0 + $0x10] sm:$0xff]
    %v856 = vld [vmem:[%s0 + $0x18] sm:$0xff]
    %857 = vmatprep.subr.mxu0 0.0
    %858 = vmatpush1.msra.mxu0 %v821
    %859 = vmatprep.subr.mxu0 0.0
    %860 = vmatpush1.msra.mxu0 %v822
    %861 = vmatprep.subr.mxu0 0.0
    %862 = vmatpush1.msra.mxu0 %v823
    %863 = vmatprep.subr.mxu0 0.0
    %864 = vmatpush1.msra.mxu0 %v824
    %865 = vmatprep.subr.mxu0 0.0
    %866 = vmatpush1.msra.mxu0 %v825
    %867 = vmatprep.subr.mxu0 0.0
    %868 = vmatpush1.msra.mxu0 %v826
    %869 = vmatprep.subr.mxu0 0.0
    %870 = vmatpush1.msra.mxu0 %v827
    %871 = vmatprep.subr.mxu0 0.0
    %872 = vmatpush1.msra.mxu0 %v828
    %873 = vmatprep.subr.mxu0 0.0
    %874 = vmatpush1.msra.mxu0 %v829
    %875 = vmatprep.subr.mxu0 0.0
    %876 = vmatpush1.msra.mxu0 %v830
    %877 = vmatprep.subr.mxu0 0.0
    %878 = vmatpush1.msra.mxu0 %v831
    %879 = vmatprep.subr.mxu0 0.0
    %880 = vmatpush1.msra.mxu0 %v832
    %881 = vmatprep.subr.mxu0 0.0
    %882 = vmatpush1.msra.mxu0 %v833
    %883 = vmatprep.subr.mxu0 0.0
    %884 = vmatpush1.msra.mxu0 %v834
    %885 = vmatprep.subr.mxu0 0.0
    %886 = vmatpush1.msra.mxu0 %v835
    %887 = vmatprep.subr.mxu0 0.0
    %888 = vmatpush1.msra.mxu0 %v836
    %889 = vmatprep.subr.mxu0 0.0
    %890 = vmatpush1.msra.mxu0 %v837
    %891 = vmatprep.subr.mxu0 0.0
    %892 = vmatpush1.msra.mxu0 %v838
    %893 = vmatprep.subr.mxu0 0.0
    %894 = vmatpush1.msra.mxu0 %v839
    %895 = vmatprep.subr.mxu0 0.0
    %896 = vmatpush1.msra.mxu0 %v840
    %897 = vmatprep.subr.mxu0 0.0
    %898 = vmatpush1.msra.mxu0 %v841
    %899 = vmatprep.subr.mxu0 0.0
    %900 = vmatpush1.msra.mxu0 %v842
    %901 = vmatprep.subr.mxu0 0.0
    %902 = vmatpush1.msra.mxu0 %v843
    %903 = vmatprep.subr.mxu0 0.0
    %904 = vmatpush1.msra.mxu0 %v844
    %905 = vmatprep.subr.mxu0 0.0
    %906 = vmatpush1.msra.mxu0 %v845
    %907 = vmatprep.subr.mxu0 0.0
    %908 = vmatpush1.msra.mxu0 %v846
    %909 = vmatprep.subr.mxu0 0.0
    %910 = vmatpush1.msra.mxu0 %v847
    %911 = vmatprep.subr.mxu0 0.0
    %912 = vmatpush1.msra.mxu0 %v848
    %913 = vmatprep.subr.mxu0 0.0
    %914 = vmatpush1.msra.mxu0 %v849
    %915 = vmatprep.subr.mxu0 0.0
    %916 = vmatpush1.msra.mxu0 %v850
    %917 = vmatprep.subr.mxu0 0.0
    %918 = vmatpush1.msra.mxu0 %v851
    %919 = vmatprep.subr.mxu0 0.0
    %920 = vmatpush1.msra.mxu0 %v852
    %921 = vmatprep.mubr.f32.mxu0 %v854
    %922 = vmatmul.mubr.f32.gmra.mrb[0].mxu0 %v853
    %v923 = vpop.f32.mrb[0].mxu0
    %v924 = vadd.f32 0.0, %v923
    %v925 = vpop.f32.mrb[0].mxu0
    %926 = vmatprep.mubr.f32.mxu0 %v856
    %927 = vmatmul.mubr.f32.gmra.mrb[0].mxu0 %v855
    %v928 = vpop.f32.mrb[0].mxu0
    %v929 = vadd.f32 0.0, %v928
    %v930 = vpop.f32.mrb[0].mxu0
    %931 = vdwg.mxu0
    %v932 = vmul.f32 %v112, %v924
    %v933 = vmul.f32 %v113, %v929
    %v934 = vadd.f32 %v932, %v933
    %v935 = vrot.slane %v934, 4
    %v936 = vadd.f32 %v934, %v935
    %v937 = vrot.slane %v936, 2
    %v938 = vadd.f32 %v936, %v937
    %v939 = vrot.slane %v938, 1
    %v940 = vadd.f32 %v938, %v939
    %941 = vst [vmem:[#allocation2] sm:$0x1] %v940
    // Predicated region
    $region30: #{tpu_custom_call.1} parent=1 // pred_check
      _
    $region31: #{tpu_custom_call.1} parent=1 // pred_check_branch
      %943 = sbr.rel (0) target = $region33
    $region32: #{tpu_custom_call.1} parent=1 // pred_region
      %s945 = ssub.s32 16, 16
      %946 = vsyncadd [#allocation3], %s945
      %s948 = sshll.u32 [#allocation2], 4
      %s949 = int_to_ptr.vmem [resolvable:$true] %s948
      %951 = dma.vmem_to_hbm [thread:$0]  %s949, 16, %s7, [#allocation3]
    $region33: #{tpu_custom_call.1} parent=1 // pred_fallthru
      _
    // Predicated region
    $region34: #{tpu_custom_call.1} parent=1 // pred_check
      _
    $region35: #{tpu_custom_call.1} parent=1 // pred_check_branch
      %953 = sbr.rel (0) target = $region37
    $region36: #{tpu_custom_call.1} parent=1 // pred_region
      %954 = dma.done [#allocation3], 16
    $region37: #{tpu_custom_call.1} parent=1 // pred_fallthru
      _
    %955 = vsyncpa [#allocation3], 1

</llo_original>
